<compile_context>
chip_gen: v5e
topology: v5e:2x2
jax: 0.10.0
libtpu: 0.0.40
codegen_flags: <defaults>
</compile_context>

<pallas_src>
import jax
import jax.numpy as jnp
from jax.experimental import pallas as pl
from jax.experimental.pallas import tpu as pltpu


_LANE = 256                               # fills v6e/v7x 256x256 MXU; 128 suffices on v5e
_DEFAULT_VMEM_BUDGET = 32 * 1024 * 1024   # conservative scoped-VMEM target (v6e/v7x default)


def _round_up(x, m):
    return ((x + m - 1) // m) * m


def _mlp_kernel(x_ref, w1_ref, b1_ref, w2_ref, b2_ref, o_ref, h_ref):
    """One (tm, tn) output tile of relu(x @ W1 + b1) @ W2 + b2.

    Grid = (batch tiles i, out-column tiles j). The hidden activation for the current
    batch tile is computed once (j == 0), kept in the VMEM scratch h_ref, and reused by
    every out-column tile (so the j axis must be "arbitrary", not "parallel").
    """
    @pl.when(pl.program_id(1) == 0)
    def _():
        # First weight-normed linear (g/||v|| already folded into w1) + ReLU.
        h = jnp.dot(x_ref[...].astype(w1_ref.dtype), w1_ref[...],
                    preferred_element_type=jnp.float32)
        h = jnp.maximum(h + b1_ref[...], 0.0)          # f32 epilogue (v5e has no bf16 VPU)
        # Dropout(p=0.0) is the identity in eval mode.
        # TODO(synk): training-mode dropout with p > 0 would need pltpu.prng_* masking.
        h_ref[...] = h.astype(h_ref.dtype)

    out = jnp.dot(h_ref[...], w2_ref[...], preferred_element_type=jnp.float32)
    o_ref[...] = (out + b2_ref[...]).astype(o_ref.dtype)


def _mlp_pallas(x, w1_t, b1, w2_t, b2, *, tm, tn, vmem_limit_bytes, flops, bytes_accessed):
    B, in_dim = x.shape
    hid_p = w1_t.shape[1]
    out_p = w2_t.shape[1]
    nb = pl.cdiv(B, tm)
    nn = pl.cdiv(out_p, tn)

    # Whole-array VMEM placement = resident, single copy (no double-buffering of the
    # constant blocks -> half the weight VMEM footprint vs. a constant-index BlockSpec).
    w1_spec = pl.BlockSpec(memory_space=pltpu.MemorySpace.VMEM)
    b1_spec = pl.BlockSpec(memory_space=pltpu.MemorySpace.VMEM)
    if nn == 1:
        w2_spec = pl.BlockSpec(memory_space=pltpu.MemorySpace.VMEM)
        b2_spec = pl.BlockSpec(memory_space=pltpu.MemorySpace.VMEM)
    else:
        # Stream W2 in (hid_p, tn) column blocks (double-buffered by the pipeline).
        w2_spec = pl.BlockSpec((hid_p, tn), lambda i, j: (0, j))
        b2_spec = pl.BlockSpec((1, tn), lambda i, j: (0, j))
    # TODO(synk): very large in_dim*hid_p would also need K/hid tiling of w1; not needed here.

    return pl.pallas_call(
        _mlp_kernel,
        out_shape=jax.ShapeDtypeStruct((B, out_p), jnp.float32),
        grid=(nb, nn),
        in_specs=[
            # x: tiled over batch; constant over j so it is not re-fetched per out tile.
            pl.BlockSpec((tm, in_dim), lambda i, j: (i, 0)),
            w1_spec, b1_spec, w2_spec, b2_spec,
        ],
        # Lane-dense output store (tn is a multiple of 128/256).
        out_specs=pl.BlockSpec((tm, tn), lambda i, j: (i, j)),
        scratch_shapes=[pltpu.VMEM((tm, hid_p), w1_t.dtype)],
        compiler_params=pltpu.CompilerParams(
            # Batch tiles independent -> v7x megacore split; j reuses the h scratch -> arbitrary.
            dimension_semantics=("parallel", "arbitrary"),
            vmem_limit_bytes=vmem_limit_bytes),
        cost_estimate=pl.CostEstimate(
            flops=flops, transcendentals=0, bytes_accessed=bytes_accessed),
    )(x, w1_t, b1, w2_t, b2)


def make_params(key, in_dim, hid_dim, out_dim, dtype=jnp.float32):
    """PyTorch-layout params after weight_norm(dim=None) + _init_weights:
      layer0: weight_v [hid, in],  weight_g scalar (= ||v||_F at init), bias [hid] = 0
      layer3: weight_v [out, hid], weight_g scalar,                      bias [out] = 0
    """
    k1, k2 = jax.random.split(key)
    bound1 = 1.0 / float(in_dim) ** 0.5
    bound2 = 1.0 / float(hid_dim) ** 0.5
    v1 = jax.random.uniform(k1, (hid_dim, in_dim), dtype, -bound1, bound1)
    v2 = jax.random.uniform(k2, (out_dim, hid_dim), dtype, -bound2, bound2)
    g1 = jnp.sqrt(jnp.sum(v1.astype(jnp.float32) ** 2))
    g2 = jnp.sqrt(jnp.sum(v2.astype(jnp.float32) ** 2))
    b1 = jnp.zeros((hid_dim,), dtype)
    b2 = jnp.zeros((out_dim,), dtype)
    return (v1, g1, b1), (v2, g2, b2)


def prepare_kernel_params(torch_params, *, compute_dtype=jnp.bfloat16, lane=_LANE):
    """One-time layout/precision prep (NOT per forward).

    * weight_norm(dim=None): W = g * v / ||v||_F. The scalar is computed here from the
      *unpadded* v and folded into the weights, so the hot path never touches the norm.
      Re-run this prep if v / g ever change (training).
    * Weights transposed to x @ W layout, zero-padded so hid/out are multiples of `lane`
      (256 fills the v6e/v7x MXU; pass lane=128 on v5e), stored in `compute_dtype`
      (bf16 by default). Biases stay f32 for the f32 epilogue.
    """
    (v1, g1, b1), (v2, g2, b2) = torch_params
    hid_dim, in_dim = v1.shape
    out_dim = v2.shape[0]
    hid_p = _round_up(hid_dim, lane)
    out_p = _round_up(out_dim, lane)

    v1f = v1.astype(jnp.float32)
    v2f = v2.astype(jnp.float32)
    s1 = g1.astype(jnp.float32) / jnp.sqrt(jnp.sum(v1f * v1f))
    s2 = g2.astype(jnp.float32) / jnp.sqrt(jnp.sum(v2f * v2f))

    w1_t = jnp.zeros((in_dim, hid_p), compute_dtype).at[:, :hid_dim].set(
        (v1f.T * s1).astype(compute_dtype))
    w2_t = jnp.zeros((hid_p, out_p), compute_dtype).at[:hid_dim, :out_dim].set(
        (v2f.T * s2).astype(compute_dtype))
    b1_p = jnp.zeros((1, hid_p), jnp.float32).at[0, :hid_dim].set(b1.astype(jnp.float32))
    b2_p = jnp.zeros((1, out_p), jnp.float32).at[0, :out_dim].set(b2.astype(jnp.float32))
    # NOTE: in_dim is deliberately left unpadded; padding it to 128 would inflate x HBM
    # traffic (e.g. 32 -> 128 quadruples x bytes) for a K-underfilled first matmul.
    return dict(w1_t=w1_t, b1=b1_p, w2_t=w2_t, b2=b2_p, out_dim=out_dim, lane=lane)


def simple_mlp_forward(x, kparams, *, vmem_budget_bytes=_DEFAULT_VMEM_BUDGET):
    """Forward equivalent to SimpleMLP(in, hid, out, dropout=0.0)(x) in eval mode.
    x: [B, in_dim] (any float dtype; cast to the weight dtype inside the kernel)."""
    B, in_dim = x.shape
    w1_t, b1 = kparams["w1_t"], kparams["b1"]
    w2_t, b2 = kparams["w2_t"], kparams["b2"]
    hid_p, out_p = w1_t.shape[1], w2_t.shape[1]
    lane = kparams["lane"]
    wsize = w1_t.dtype.itemsize

    # ---- batch tile: no jnp.pad of x; the grid uses cdiv with a ragged final tile.
    if B <= 8:
        tm = B                                   # block dim == full array dim -> allowed
    else:
        tm = max(8, min(512, _round_up(pl.cdiv(B, 8), 8)))   # aim for >= 8 batch tiles
        # bound the (tm, hid_p) f32 matmul result / hidden scratch to ~8 MiB (v7x VMEM)
        tm_cap = max(8, ((8 * 1024 * 1024) // (4 * hid_p)) // 8 * 8)
        tm = min(tm, tm_cap)

    # ---- W2 residency decision: stream W2 once weights pass ~half the VMEM budget.
    w_bytes = w1_t.size * wsize + w2_t.size * wsize + (b1.size + b2.size) * 4
    if w_bytes <= vmem_budget_bytes // 2:
        tn = out_p                               # fully resident W2 (single copy)
    else:
        max_tn = max(lane,
                     ((vmem_budget_bytes // 2) // (2 * hid_p * wsize)) // lane * lane)
        tn = int(min(out_p, max_tn))
    nb, nn = pl.cdiv(B, tm), pl.cdiv(out_p, tn)

    # ---- VMEM limit computed from the actual buffers (capped for v7x's 64 MiB/TC).
    x_tile_b = 2 * tm * in_dim * x.dtype.itemsize            # double-buffered x tiles
    o_tile_b = 2 * tm * tn * 4                                # double-buffered f32 out tiles
    w1_b = w1_t.size * wsize + b1.size * 4                    # resident, single copy
    w2_b = (w2_t.size * wsize + b2.size * 4) if nn == 1 else 2 * (hid_p * tn * wsize + tn * 4)
    h_b = tm * hid_p * wsize                                  # hidden scratch
    needed = x_tile_b + o_tile_b + w1_b + w2_b + h_b
    vmem_limit = int(min(64 * 1024 * 1024, max(2 * needed, 8 * 1024 * 1024)))

    flops = 2 * B * (in_dim * hid_p + hid_p * out_p)
    w2_reads = 1 if nn == 1 else nb
    bytes_accessed = int(x.size * x.dtype.itemsize
                         + w1_t.size * wsize + w2_reads * w2_t.size * wsize
                         + (b1.size + b2.size) * 4 + B * out_p * 4)

    out_padded = _mlp_pallas(x, w1_t, b1, w2_t, b2, tm=tm, tn=tn,
                             vmem_limit_bytes=vmem_limit,
                             flops=flops, bytes_accessed=bytes_accessed)
    # Slice away the zero-padded output lanes (padded columns are exactly zero+bias=0).
    return out_padded[:, :kparams["out_dim"]]


def reference_forward(x, torch_params):
    (v1, g1, b1), (v2, g2, b2) = torch_params
    w1 = g1 * v1 / jnp.sqrt(jnp.sum(v1.astype(jnp.float32) ** 2))
    w2 = g2 * v2 / jnp.sqrt(jnp.sum(v2.astype(jnp.float32) ** 2))
    h = jnp.maximum(x @ w1.T + b1, 0.0)
    return h @ w2.T + b2


if __name__ == "__main__":
    key = jax.random.PRNGKey(0)
    kx1, kp1, kx2, kp2 = jax.random.split(key, 4)

    # --- f32 compute path: tight check against the pure-JAX reference -------------
    B, in_dim, hid_dim, out_dim = 8, 32, 64, 16
    x = jax.random.normal(kx1, (B, in_dim), jnp.float32)
    torch_params = make_params(kp1, in_dim, hid_dim, out_dim)
    kparams_f32 = prepare_kernel_params(torch_params, compute_dtype=jnp.float32)
    out_f32 = jax.block_until_ready(simple_mlp_forward(x, kparams_f32))
    ref = reference_forward(x, torch_params)
    assert out_f32.shape == (B, out_dim)
    assert jnp.allclose(out_f32, ref, atol=2e-5, rtol=2e-5), "f32 kernel mismatch vs reference"

    # --- bf16 compute path (default) + forced out_p tiling (streams W2 in column
    #     blocks, nn > 1) to exercise the N-tiled grid -------------------------------
    B2, in2, hid2, out2 = 64, 32, 128, 384
    x2 = jax.random.normal(kx2, (B2, in2), jnp.float32)
    torch_params2 = make_params(kp2, in2, hid2, out2)
    kparams_bf16 = prepare_kernel_params(torch_params2)          # bf16 weights by default
    out_bf16 = jax.block_until_ready(
        simple_mlp_forward(x2, kparams_bf16, vmem_budget_bytes=512 * 1024))
    ref2 = reference_forward(x2, torch_params2)
    assert out_bf16.shape == (B2, out2)
    assert jnp.allclose(out_bf16, ref2, atol=5e-2, rtol=5e-2), "bf16 kernel mismatch vs reference"

    print("KERNEL_OK")
</pallas_src>

<mosaic_0001>
module attributes {stable_mosaic.version = 11 : i64} {
  func.func @_mlp_kernel(%arg0: i32, %arg1: i32, %arg2: memref<8x32xf32, #tpu.memory_space<vmem>>, %arg3: memref<32x256xf32, #tpu.memory_space<vmem>>, %arg4: memref<1x256xf32, #tpu.memory_space<vmem>>, %arg5: memref<256x256xf32, #tpu.memory_space<vmem>>, %arg6: memref<1x256xf32, #tpu.memory_space<vmem>>, %arg7: memref<8x256xf32, #tpu.memory_space<vmem>>, %arg8: memref<8x256xf32, #tpu.memory_space<vmem>>) attributes {dimension_semantics = [#tpu.dimension_semantics<parallel>, #tpu.dimension_semantics<arbitrary>], iteration_bounds = array<i64: 1, 1>, scalar_prefetch = 0 : i64, scratch_operands = 1 : i64, tpu.core_type = #tpu.core_type<tc>, window_params = [{transform_indices = @transform_0, window_bounds = array<i64: 8, 32>}, {pipeline_mode = #tpu.pipeline_mode<synchronous>, transform_indices = @transform_1, window_bounds = array<i64: 32, 256>}, {pipeline_mode = #tpu.pipeline_mode<synchronous>, transform_indices = @transform_2, window_bounds = array<i64: 1, 256>}, {pipeline_mode = #tpu.pipeline_mode<synchronous>, transform_indices = @transform_3, window_bounds = array<i64: 256, 256>}, {pipeline_mode = #tpu.pipeline_mode<synchronous>, transform_indices = @transform_4, window_bounds = array<i64: 1, 256>}, {transform_indices = @transform_5, window_bounds = array<i64: 8, 256>}]} {
    %c0_i32 = arith.constant 0 : i32
    %0 = arith.cmpi eq, %arg1, %c0_i32 : i32
    %1 = arith.extui %0 : i1 to i32
    %c0_i32_0 = arith.constant 0 : i32
    %2 = arith.cmpi ne, %1, %c0_i32_0 : i32
    scf.if %2 {
      %c0_8 = arith.constant 0 : index
      %c0_9 = arith.constant 0 : index
      %10 = vector.load %arg2[%c0_8, %c0_9] : memref<8x32xf32, #tpu.memory_space<vmem>>, vector<8x32xf32>
      %c0_10 = arith.constant 0 : index
      %c0_11 = arith.constant 0 : index
      %11 = vector.load %arg3[%c0_10, %c0_11] : memref<32x256xf32, #tpu.memory_space<vmem>>, vector<32x256xf32>
      %cst_12 = arith.constant dense<0.000000e+00> : vector<8x256xf32>
      %12 = tpu.matmul %10, %11, %cst_12 {dimension_numbers = #tpu.dot_dimension_numbers<[1], [0], [0], [1], [0, 0, 1, 1], [], []>} : vector<8x32xf32>, vector<32x256xf32>, vector<8x256xf32> -> vector<8x256xf32>
      %c0_13 = arith.constant 0 : index
      %c0_14 = arith.constant 0 : index
      %13 = vector.load %arg4[%c0_13, %c0_14] : memref<1x256xf32, #tpu.memory_space<vmem>>, vector<1x256xf32>
      %14 = vector.broadcast %13 : vector<1x256xf32> to vector<8x256xf32>
      %15 = arith.addf %12, %14 : vector<8x256xf32>
      %cst_15 = arith.constant 0.000000e+00 : f32
      %16 = vector.broadcast %cst_15 : f32 to vector<8x256xf32>
      %17 = arith.maximumf %15, %16 : vector<8x256xf32>
      %c0_16 = arith.constant 0 : index
      %c0_17 = arith.constant 0 : index
      %18 = vector.load %arg8[%c0_16, %c0_17] : memref<8x256xf32, #tpu.memory_space<vmem>>, vector<8x256xf32>
      tpu.vector_store %arg8[%c0_16, %c0_17], %17 {strides = array<i32>} : memref<8x256xf32, #tpu.memory_space<vmem>>, vector<8x256xf32>,
    } else {
    }
    %c0 = arith.constant 0 : index
    %c0_1 = arith.constant 0 : index
    %3 = vector.load %arg8[%c0, %c0_1] : memref<8x256xf32, #tpu.memory_space<vmem>>, vector<8x256xf32>
    %c0_2 = arith.constant 0 : index
    %c0_3 = arith.constant 0 : index
    %4 = vector.load %arg5[%c0_2, %c0_3] : memref<256x256xf32, #tpu.memory_space<vmem>>, vector<256x256xf32>
    %cst = arith.constant dense<0.000000e+00> : vector<8x256xf32>
    %5 = tpu.matmul %3, %4, %cst {dimension_numbers = #tpu.dot_dimension_numbers<[1], [0], [0], [1], [0, 0, 1, 1], [], []>} : vector<8x256xf32>, vector<256x256xf32>, vector<8x256xf32> -> vector<8x256xf32>
    %c0_4 = arith.constant 0 : index
    %c0_5 = arith.constant 0 : index
    %6 = vector.load %arg6[%c0_4, %c0_5] : memref<1x256xf32, #tpu.memory_space<vmem>>, vector<1x256xf32>
    %7 = vector.broadcast %6 : vector<1x256xf32> to vector<8x256xf32>
    %8 = arith.addf %5, %7 : vector<8x256xf32>
    %c0_6 = arith.constant 0 : index
    %c0_7 = arith.constant 0 : index
    %9 = vector.load %arg7[%c0_6, %c0_7] : memref<8x256xf32, #tpu.memory_space<vmem>>, vector<8x256xf32>
    tpu.vector_store %arg7[%c0_6, %c0_7], %8 {strides = array<i32>} : memref<8x256xf32, #tpu.memory_space<vmem>>, vector<8x256xf32>,
    return
  }
  func.func @transform_0(%arg0: i32, %arg1: i32) -> (i32, i32) {
    %c0_i32 = arith.constant 0 : i32
    %c0_i32_0 = arith.constant 0 : i32
    return %arg0, %c0_i32 : i32, i32
  }
  func.func @transform_1(%arg0: i32, %arg1: i32) -> (i32, i32) {
    %c0_i32 = arith.constant 0 : i32
    %c0_i32_0 = arith.constant 0 : i32
    %c0_i32_1 = arith.constant 0 : i32
    return %c0_i32, %c0_i32_0 : i32, i32
  }
  func.func @transform_2(%arg0: i32, %arg1: i32) -> (i32, i32) {
    %c0_i32 = arith.constant 0 : i32
    %c0_i32_0 = arith.constant 0 : i32
    %c0_i32_1 = arith.constant 0 : i32
    return %c0_i32, %c0_i32_0 : i32, i32
  }
  func.func @transform_3(%arg0: i32, %arg1: i32) -> (i32, i32) {
    %c0_i32 = arith.constant 0 : i32
    %c0_i32_0 = arith.constant 0 : i32
    %c0_i32_1 = arith.constant 0 : i32
    return %c0_i32, %c0_i32_0 : i32, i32
  }
  func.func @transform_4(%arg0: i32, %arg1: i32) -> (i32, i32) {
    %c0_i32 = arith.constant 0 : i32
    %c0_i32_0 = arith.constant 0 : i32
    %c0_i32_1 = arith.constant 0 : i32
    return %c0_i32, %c0_i32_0 : i32, i32
  }
  func.func @transform_5(%arg0: i32, %arg1: i32) -> (i32, i32) {
    %c0_i32 = arith.constant 0 : i32
    return %arg0, %arg1 : i32, i32
  }
}

</mosaic_0001>

<llo_original>
// kernel: tpu_custom_call.1
$region0: #{tpu_custom_call.1}
  #allocation0 [shape = 'u32[]', space=smem, size = 0x4, offset = 0x4, fixed_abs, tag = 'smem constant byte address 0x4 - core index']
  #allocation1 [shape = 'u32[72,128]{1,0:T(1,128)}', space=vmem, size = 0x9000, scoped, tag = 'internal scratch']
  #allocation2 [shape = 'f32[8,256]{1,0:T(8,128)}', space=vmem, size = 0x2000, scoped, tag = 'scratch operand']
  %s0 = inlined_call_operand.hbm [shape: f32[8,32], index: 0, kind: input, shape index: {}]
  %s1 = inlined_call_operand.hbm [shape: f32[32,256], index: 1, kind: input, shape index: {}]
  %s2 = inlined_call_operand.hbm [shape: f32[1,256], index: 2, kind: input, shape index: {}]
  %s3 = inlined_call_operand.hbm [shape: f32[256,256], index: 3, kind: input, shape index: {}]
  %s4 = inlined_call_operand.vmem [shape: f32[1,256], index: 4, kind: input, shape index: {}]
  %s5 = inlined_call_operand.hbm [shape: f32[8,256], index: 5, kind: output, shape index: {}]
  %s6 = sld [smem:[#allocation0]]
  $region50: #{tpu_custom_call.1} parent=0
    _
  %s8 = ssub.s32 1, %s6
  %s9 = scalar_select 0, %s8, %s6
  $region1: #{tpu_custom_call.1} parent=0
    #allocation3 [shape = 'u8[4096]{0}', space=vmem, size = 0x1000, scoped, tag = 'input window, operand 0, single buffered']
    #allocation4 [shape = 's32[1]{0}', space=sflag, size = 0x4, scoped, tag = 'scoped memory for tpu_custom_call.1']
    #allocation5 [shape = 's32[1]{0}', space=sflag, size = 0x4, scoped, tag = 'scoped memory for tpu_custom_call.1']
    #allocation6 [shape = 'u8[32768]{0}', space=vmem, size = 0x8000, scoped, tag = 'input window, operand 1, single buffered']
    #allocation7 [shape = 's32[1]{0}', space=sflag, size = 0x4, scoped, tag = 'scoped memory for tpu_custom_call.1']
    #allocation8 [shape = 'u8[1024]{0}', space=vmem, size = 0x400, scoped, tag = 'input window, operand 2, single buffered']
    #allocation9 [shape = 'u8[262144]{0}', space=vmem, size = 0x40000, scoped, tag = 'input window, operand 3, single buffered']
    #allocation10 [shape = 's32[1]{0}', space=sflag, size = 0x4, scoped, tag = 'scoped memory for tpu_custom_call.1']
    #allocation11 [shape = 'u8[8192]{0}', space=vmem, size = 0x2000, scoped, tag = 'output window, operand 0, single buffered']
    %10 = vsyncpa [#allocation4], 0
    %11 = vsyncpa [#allocation7], 0
    %12 = vsyncpa [#allocation10], 0
    %13 = vsyncpa [#allocation5], 0
    // Predicated region
    $region2: #{tpu_custom_call.1} parent=1 // pred_check
      _
    $region3: #{tpu_custom_call.1} parent=1 // pred_check_branch
      %15 = sbr.rel (0) target = $region5
    $region4: #{tpu_custom_call.1} parent=1 // pred_region
      %17 = vsyncadd [#allocation4], 0
      %s19 = sshll.u32 %s0, 4
      %s20 = int_to_ptr.hbm [resolvable:$true] %s19
      %s21 = sshll.u32 [#allocation3], 4
      %s22 = int_to_ptr.vmem [resolvable:$true] %s21
      %24 = dma.hbm_to_vmem [thread:$0]  %s20, 128, %s22, [#allocation4]
    $region5: #{tpu_custom_call.1} parent=1 // pred_fallthru
      _
    // Predicated region
    $region6: #{tpu_custom_call.1} parent=1 // pred_check
      _
    $region7: #{tpu_custom_call.1} parent=1 // pred_check_branch
      %26 = sbr.rel (0) target = $region9
    $region8: #{tpu_custom_call.1} parent=1 // pred_region
      %28 = vsyncadd [#allocation7], 0
      %s29 = sshll.u32 %s1, 4
      %s30 = int_to_ptr.hbm [resolvable:$true] %s29
      %s31 = sshll.u32 [#allocation6], 4
      %s32 = int_to_ptr.vmem [resolvable:$true] %s31
      %37 = dma.hbm_to_vmem [thread:$0]  %s30, 1024, %s32, [#allocation7], 256, 256, 16
    $region9: #{tpu_custom_call.1} parent=1 // pred_fallthru
      _
    // Predicated region
    $region10: #{tpu_custom_call.1} parent=1 // pred_check
      _
    $region11: #{tpu_custom_call.1} parent=1 // pred_check_branch
      %39 = sbr.rel (0) target = $region13
    $region12: #{tpu_custom_call.1} parent=1 // pred_region
      %41 = vsyncadd [#allocation7], 0
      %s43 = sshll.u32 %s2, 4
      %s44 = int_to_ptr.hbm [resolvable:$true] %s43
      %s45 = sshll.u32 [#allocation8], 4
      %s46 = int_to_ptr.vmem [resolvable:$true] %s45
      %48 = dma.hbm_to_vmem [thread:$0]  %s44, 32, %s46, [#allocation7]
    $region13: #{tpu_custom_call.1} parent=1 // pred_fallthru
      _
    // Predicated region
    $region14: #{tpu_custom_call.1} parent=1 // pred_check
      _
    $region15: #{tpu_custom_call.1} parent=1 // pred_check_branch
      %50 = sbr.rel (0) target = $region17
    $region16: #{tpu_custom_call.1} parent=1 // pred_region
      %52 = vsyncadd [#allocation10], 0
      %s53 = sshll.u32 %s3, 4
      %s54 = int_to_ptr.hbm [resolvable:$true] %s53
      %s55 = sshll.u32 [#allocation9], 4
      %s56 = int_to_ptr.vmem [resolvable:$true] %s55
      %61 = dma.hbm_to_vmem [thread:$0]  %s54, 8192, %s56, [#allocation10], 256, 256, 16
    $region17: #{tpu_custom_call.1} parent=1 // pred_fallthru
      _
    // Predicated region
    $region18: #{tpu_custom_call.1} parent=1 // pred_check
      _
    $region19: #{tpu_custom_call.1} parent=1 // pred_check_branch
      %63 = sbr.rel (0) target = $region21
    $region20: #{tpu_custom_call.1} parent=1 // pred_region
      _
    $region21: #{tpu_custom_call.1} parent=1 // pred_fallthru
      _
    // Predicated region
    $region22: #{tpu_custom_call.1} parent=1 // pred_check
      _
    $region23: #{tpu_custom_call.1} parent=1 // pred_check_branch
      %65 = sbr.rel (0) target = $region25
    $region24: #{tpu_custom_call.1} parent=1 // pred_region
      %67 = dma.done [#allocation4], 128
    $region25: #{tpu_custom_call.1} parent=1 // pred_fallthru
      _
    // Predicated region
    $region26: #{tpu_custom_call.1} parent=1 // pred_check
      _
    $region27: #{tpu_custom_call.1} parent=1 // pred_check_branch
      %69 = sbr.rel (0) target = $region29
    $region28: #{tpu_custom_call.1} parent=1 // pred_region
      %71 = dma.done [#allocation7], 1024
    $region29: #{tpu_custom_call.1} parent=1 // pred_fallthru
      _
    // Predicated region
    $region30: #{tpu_custom_call.1} parent=1 // pred_check
      _
    $region31: #{tpu_custom_call.1} parent=1 // pred_check_branch
      %73 = sbr.rel (0) target = $region33
    $region32: #{tpu_custom_call.1} parent=1 // pred_region
      %75 = dma.done [#allocation7], 32
    $region33: #{tpu_custom_call.1} parent=1 // pred_fallthru
      _
    // Predicated region
    $region34: #{tpu_custom_call.1} parent=1 // pred_check
      _
    $region35: #{tpu_custom_call.1} parent=1 // pred_check_branch
      %77 = sbr.rel (0) target = $region37
    $region36: #{tpu_custom_call.1} parent=1 // pred_region
      %79 = dma.done [#allocation10], 8192
    $region37: #{tpu_custom_call.1} parent=1 // pred_fallthru
      _
    %p80 = scmp.eq.s32.totalorder 0, 0
    // Predicated region
    $region38: #{tpu_custom_call.1} parent=1 // pred_check
      %p81 = pneg %p80
    $region39: #{tpu_custom_call.1} parent=1 // pred_check_branch
      %83 = sbr.rel (%p81) target = $region41
    $region40: #{tpu_custom_call.1} parent=1 // pred_region
      %v84 = vld [vmem:[#allocation3] sm:$0xff]
      %v85 = vld [vmem:[#allocation6] sm:$0xff]
      %v86 = vld [vmem:[#allocation6 + $0x8] sm:$0xff]
      %v87 = vld [vmem:[#allocation6 + $0x10] sm:$0xff]
      %v88 = vld [vmem:[#allocation6 + $0x18] sm:$0xff]
      %v89 = vld [vmem:[#allocation6 + $0x20] sm:$0xff]
      %v90 = vld [vmem:[#allocation6 + $0x28] sm:$0xff]
      %v91 = vld [vmem:[#allocation6 + $0x30] sm:$0xff]
      %v92 = vld [vmem:[#allocation6 + $0x38] sm:$0xff]
      %v93 = vld [vmem:[#allocation8] sm:$0x3]
      %v95 = vperm.slane %v93, 0
      %v96 = vperm.slane %v93, 1
      %vm99 = vcmask 261120
      %v101 = vsel %vm99, %v84, 0
      %103 = vmatpush.msra.mxu0 0.0
      %104 = vmatpush.msra.mxu0 0.0
      %105 = vmatpush.msra.mxu0 0.0
      %106 = vmatpush.msra.mxu0 0.0
      %107 = vmatpush.msra.mxu0 0.0
      %108 = vmatpush.msra.mxu0 0.0
      %109 = vmatpush.msra.mxu0 0.0
      %110 = vmatpush.msra.mxu0 0.0
      %111 = vmatpush.msra.mxu0 0.0
      %112 = vmatpush.msra.mxu0 0.0
      %113 = vmatpush.msra.mxu0 0.0
      %114 = vmatpush.msra.mxu0 0.0
      %115 = vmatpush.msra.mxu0 %v91
      %116 = vmatpush.msra.mxu0 %v89
      %117 = vmatpush.msra.mxu0 %v87
      %118 = vmatpush.msra.mxu0 %v85
      %119 = vmatmul.f32.gmra.mxu0 %v101
      %v120 = vpop.f32.mrf.mxu0
      %v121 = vadd.f32 %v95, %v120
      %122 = vdwg.mxu0
      %123 = vmatpush.msra.mxu0 0.0
      %124 = vmatpush.msra.mxu0 0.0
      %125 = vmatpush.msra.mxu0 0.0
      %126 = vmatpush.msra.mxu0 0.0
      %127 = vmatpush.msra.mxu0 0.0
      %128 = vmatpush.msra.mxu0 0.0
      %129 = vmatpush.msra.mxu0 0.0
      %130 = vmatpush.msra.mxu0 0.0
      %131 = vmatpush.msra.mxu0 0.0
      %132 = vmatpush.msra.mxu0 0.0
      %133 = vmatpush.msra.mxu0 0.0
      %134 = vmatpush.msra.mxu0 0.0
      %135 = vmatpush.msra.mxu0 %v92
      %136 = vmatpush.msra.mxu0 %v90
      %137 = vmatpush.msra.mxu0 %v88
      %138 = vmatpush.msra.mxu0 %v86
      %139 = vmatmul.f32.gmra.mxu0 %v101
      %v140 = vpop.f32.mrf.mxu0
      %v141 = vadd.f32 %v96, %v140
      %142 = vdwg.mxu0
      %v143 = vmax.f32 %v121, 0.0
      %v144 = vmax.f32 %v141, 0.0
      %145 = vst [vmem:[#allocation2] sm:$0xff] %v143
      %146 = vst [vmem:[#allocation2 + $0x8] sm:$0xff] %v144
    $region41: #{tpu_custom_call.1} parent=1 // pred_fallthru
      _
    %v147 = vld [vmem:[#allocation2] sm:$0xff]
    %v148 = vld [vmem:[#allocation2 + $0x8] sm:$0xff]
    %v149 = vld [vmem:[#allocation9] sm:$0xff]
    %v150 = vld [vmem:[#allocation9 + $0x8] sm:$0xff]
    %v151 = vld [vmem:[#allocation9 + $0x10] sm:$0xff]
    %v152 = vld [vmem:[#allocation9 + $0x18] sm:$0xff]
    %v153 = vld [vmem:[#allocation9 + $0x20] sm:$0xff]
    %v154 = vld [vmem:[#allocation9 + $0x28] sm:$0xff]
    %v155 = vld [vmem:[#allocation9 + $0x30] sm:$0xff]
    %v156 = vld [vmem:[#allocation9 + $0x38] sm:$0xff]
    %v157 = vld [vmem:[#allocation9 + $0x40] sm:$0xff]
    %v158 = vld [vmem:[#allocation9 + $0x48] sm:$0xff]
    %v159 = vld [vmem:[#allocation9 + $0x50] sm:$0xff]
    %v160 = vld [vmem:[#allocation9 + $0x58] sm:$0xff]
    %v161 = vld [vmem:[#allocation9 + $0x60] sm:$0xff]
    %v162 = vld [vmem:[#allocation9 + $0x68] sm:$0xff]
    %v163 = vld [vmem:[#allocation9 + $0x70] sm:$0xff]
    %v164 = vld [vmem:[#allocation9 + $0x78] sm:$0xff]
    %v165 = vld [vmem:[#allocation9 + $0x80] sm:$0xff]
    %v166 = vld [vmem:[#allocation9 + $0x88] sm:$0xff]
    %v167 = vld [vmem:[#allocation9 + $0x90] sm:$0xff]
    %v168 = vld [vmem:[#allocation9 + $0x98] sm:$0xff]
    %v169 = vld [vmem:[#allocation9 + $0xa0] sm:$0xff]
    %v170 = vld [vmem:[#allocation9 + $0xa8] sm:$0xff]
    %v171 = vld [vmem:[#allocation9 + $0xb0] sm:$0xff]
    %v172 = vld [vmem:[#allocation9 + $0xb8] sm:$0xff]
    %v173 = vld [vmem:[#allocation9 + $0xc0] sm:$0xff]
    %v174 = vld [vmem:[#allocation9 + $0xc8] sm:$0xff]
    %v175 = vld [vmem:[#allocation9 + $0xd0] sm:$0xff]
    %v176 = vld [vmem:[#allocation9 + $0xd8] sm:$0xff]
    %v177 = vld [vmem:[#allocation9 + $0xe0] sm:$0xff]
    %v178 = vld [vmem:[#allocation9 + $0xe8] sm:$0xff]
    %v179 = vld [vmem:[#allocation9 + $0xf0] sm:$0xff]
    %v180 = vld [vmem:[#allocation9 + $0xf8] sm:$0xff]
    %v181 = vld [vmem:[#allocation9 + $0x100] sm:$0xff]
    %v182 = vld [vmem:[#allocation9 + $0x108] sm:$0xff]
    %v183 = vld [vmem:[#allocation9 + $0x110] sm:$0xff]
    %v184 = vld [vmem:[#allocation9 + $0x118] sm:$0xff]
    %v185 = vld [vmem:[#allocation9 + $0x120] sm:$0xff]
    %v186 = vld [vmem:[#allocation9 + $0x128] sm:$0xff]
    %v187 = vld [vmem:[#allocation9 + $0x130] sm:$0xff]
    %v188 = vld [vmem:[#allocation9 + $0x138] sm:$0xff]
    %v189 = vld [vmem:[#allocation9 + $0x140] sm:$0xff]
    %v190 = vld [vmem:[#allocation9 + $0x148] sm:$0xff]
    %v191 = vld [vmem:[#allocation9 + $0x150] sm:$0xff]
    %v192 = vld [vmem:[#allocation9 + $0x158] sm:$0xff]
    %v193 = vld [vmem:[#allocation9 + $0x160] sm:$0xff]
    %v194 = vld [vmem:[#allocation9 + $0x168] sm:$0xff]
    %v195 = vld [vmem:[#allocation9 + $0x170] sm:$0xff]
    %v196 = vld [vmem:[#allocation9 + $0x178] sm:$0xff]
    %v197 = vld [vmem:[#allocation9 + $0x180] sm:$0xff]
    %v198 = vld [vmem:[#allocation9 + $0x188] sm:$0xff]
    %v199 = vld [vmem:[#allocation9 + $0x190] sm:$0xff]
    %v200 = vld [vmem:[#allocation9 + $0x198] sm:$0xff]
    %v201 = vld [vmem:[#allocation9 + $0x1a0] sm:$0xff]
    %v202 = vld [vmem:[#allocation9 + $0x1a8] sm:$0xff]
    %v203 = vld [vmem:[#allocation9 + $0x1b0] sm:$0xff]
    %v204 = vld [vmem:[#allocation9 + $0x1b8] sm:$0xff]
    %v205 = vld [vmem:[#allocation9 + $0x1c0] sm:$0xff]
    %v206 = vld [vmem:[#allocation9 + $0x1c8] sm:$0xff]
    %v207 = vld [vmem:[#allocation9 + $0x1d0] sm:$0xff]
    %v208 = vld [vmem:[#allocation9 + $0x1d8] sm:$0xff]
    %v209 = vld [vmem:[#allocation9 + $0x1e0] sm:$0xff]
    %v210 = vld [vmem:[#allocation9 + $0x1e8] sm:$0xff]
    %v211 = vld [vmem:[#allocation9 + $0x1f0] sm:$0xff]
    %v212 = vld [vmem:[#allocation9 + $0x1f8] sm:$0xff]
    %v213 = vld [vmem:[%s4] sm:$0x3]
    %v215 = vperm.slane %v213, 0
    %v216 = vperm.slane %v213, 1
    %219 = vmatpush.msra.mxu0 %v179
    %220 = vmatpush.msra.mxu0 %v177
    %221 = vmatpush.msra.mxu0 %v175
    %222 = vmatpush.msra.mxu0 %v173
    %223 = vmatpush.msra.mxu0 %v171
    %224 = vmatpush.msra.mxu0 %v169
    %225 = vmatpush.msra.mxu0 %v167
    %226 = vmatpush.msra.mxu0 %v165
    %227 = vmatpush.msra.mxu0 %v163
    %228 = vmatpush.msra.mxu0 %v161
    %229 = vmatpush.msra.mxu0 %v159
    %230 = vmatpush.msra.mxu0 %v157
    %231 = vmatpush.msra.mxu0 %v155
    %232 = vmatpush.msra.mxu0 %v153
    %233 = vmatpush.msra.mxu0 %v151
    %234 = vmatpush.msra.mxu0 %v149
    %235 = vmatmul.f32.gmra.mxu0 %v147
    %v236 = vpop.f32.mrf.mxu0
    %v237 = vadd.f32 %v215, %v236
    %238 = vdwg.mxu0
    %239 = vmatpush.msra.mxu0 %v211
    %240 = vmatpush.msra.mxu0 %v209
    %241 = vmatpush.msra.mxu0 %v207
    %242 = vmatpush.msra.mxu0 %v205
    %243 = vmatpush.msra.mxu0 %v203
    %244 = vmatpush.msra.mxu0 %v201
    %245 = vmatpush.msra.mxu0 %v199
    %246 = vmatpush.msra.mxu0 %v197
    %247 = vmatpush.msra.mxu0 %v195
    %248 = vmatpush.msra.mxu0 %v193
    %249 = vmatpush.msra.mxu0 %v191
    %250 = vmatpush.msra.mxu0 %v189
    %251 = vmatpush.msra.mxu0 %v187
    %252 = vmatpush.msra.mxu0 %v185
    %253 = vmatpush.msra.mxu0 %v183
    %254 = vmatpush.msra.mxu0 %v181
    %255 = vmatmul.f32.gmra.mxu0 %v148
    %v256 = vpop.f32.mrf.mxu0
    %v257 = vadd.f32 %v237, %v256
    %258 = vdwg.mxu0
    %259 = vmatpush.msra.mxu0 %v180
    %260 = vmatpush.msra.mxu0 %v178
    %261 = vmatpush.msra.mxu0 %v176
    %262 = vmatpush.msra.mxu0 %v174
    %263 = vmatpush.msra.mxu0 %v172
    %264 = vmatpush.msra.mxu0 %v170
    %265 = vmatpush.msra.mxu0 %v168
    %266 = vmatpush.msra.mxu0 %v166
    %267 = vmatpush.msra.mxu0 %v164
    %268 = vmatpush.msra.mxu0 %v162
    %269 = vmatpush.msra.mxu0 %v160
    %270 = vmatpush.msra.mxu0 %v158
    %271 = vmatpush.msra.mxu0 %v156
    %272 = vmatpush.msra.mxu0 %v154
    %273 = vmatpush.msra.mxu0 %v152
    %274 = vmatpush.msra.mxu0 %v150
    %275 = vmatmul.f32.gmra.mxu0 %v147
    %v276 = vpop.f32.mrf.mxu0
    %v277 = vadd.f32 %v216, %v276
    %278 = vdwg.mxu0
    %279 = vmatpush.msra.mxu0 %v212
    %280 = vmatpush.msra.mxu0 %v210
    %281 = vmatpush.msra.mxu0 %v208
    %282 = vmatpush.msra.mxu0 %v206
    %283 = vmatpush.msra.mxu0 %v204
    %284 = vmatpush.msra.mxu0 %v202
    %285 = vmatpush.msra.mxu0 %v200
    %286 = vmatpush.msra.mxu0 %v198
    %287 = vmatpush.msra.mxu0 %v196
    %288 = vmatpush.msra.mxu0 %v194
    %289 = vmatpush.msra.mxu0 %v192
    %290 = vmatpush.msra.mxu0 %v190
    %291 = vmatpush.msra.mxu0 %v188
    %292 = vmatpush.msra.mxu0 %v186
    %293 = vmatpush.msra.mxu0 %v184
    %294 = vmatpush.msra.mxu0 %v182
    %295 = vmatmul.f32.gmra.mxu0 %v148
    %v296 = vpop.f32.mrf.mxu0
    %v297 = vadd.f32 %v277, %v296
    %298 = vdwg.mxu0
    %299 = vst [vmem:[#allocation11] sm:$0xff] %v257
    %300 = vst [vmem:[#allocation11 + $0x8] sm:$0xff] %v297
    // Predicated region
    $region42: #{tpu_custom_call.1} parent=1 // pred_check
      _
    $region43: #{tpu_custom_call.1} parent=1 // pred_check_branch
      %302 = sbr.rel (0) target = $region45
    $region44: #{tpu_custom_call.1} parent=1 // pred_region
      %304 = vsyncadd [#allocation5], 0
      %s306 = sshll.u32 [#allocation11], 4
      %s307 = int_to_ptr.vmem [resolvable:$true] %s306
      %s308 = sshll.u32 %s5, 4
      %s309 = int_to_ptr.hbm [resolvable:$true] %s308
      %311 = dma.vmem_to_hbm [thread:$0]  %s307, 256, %s309, [#allocation5]
    $region45: #{tpu_custom_call.1} parent=1 // pred_fallthru
      _
    // Predicated region
    $region46: #{tpu_custom_call.1} parent=1 // pred_check
      _
    $region47: #{tpu_custom_call.1} parent=1 // pred_check_branch
      %313 = sbr.rel (0) target = $region49
    $region48: #{tpu_custom_call.1} parent=1 // pred_region
      %315 = dma.done [#allocation5], 256
    $region49: #{tpu_custom_call.1} parent=1 // pred_fallthru
      _
    %316 = vsyncpa [#allocation4], 1
    %317 = vsyncpa [#allocation7], 1
    %318 = vsyncpa [#allocation10], 1
    %319 = vsyncpa [#allocation5], 1

</llo_original>
